<compile_context>
chip_gen: v7x
topology: tpu7x:2x2x1
jax: 0.10.0
libtpu: 0.0.40
codegen_flags: <defaults>
</compile_context>

<pallas_src>
import functools
import math

import jax
import jax.numpy as jnp
from jax.experimental import pallas as pl
from jax.experimental.pallas import tpu as pltpu


# ---------------------------------------------------------------------------
# buffer setup (plain JAX glue, mirrors torch __init__)
# ---------------------------------------------------------------------------
def make_positional_encoding_table(max_len, dim, dtype=jnp.float32):
    position = jnp.arange(max_len, dtype=jnp.float32)[:, None]               # (L, 1)
    div_term = jnp.exp(
        jnp.arange(0, dim, 2, dtype=jnp.float32) * -(math.log(10000.0) / dim))
    pe = jnp.zeros((max_len, dim), dtype=jnp.float32)
    pe = pe.at[:, 0::2].set(jnp.sin(position * div_term))
    pe = pe.at[:, 1::2].set(jnp.cos(position * div_term))
    return pe.astype(dtype)


# ---------------------------------------------------------------------------
# counter-based dropout RNG (pure int32 VPU ops; no TPU-only primitives)
# ---------------------------------------------------------------------------
_GOLDEN = -1640531527          # 0x9E3779B9 as int32


def _lsr(x, k):
    """Logical right shift of an int32 array by a static amount k."""
    return jnp.bitwise_and(x >> k, jnp.int32((1 << (32 - k)) - 1))


def _fmix32(x):
    """murmur3 fmix32 finalizer (bit-exact in two's-complement int32)."""
    x = jnp.bitwise_xor(x, _lsr(x, 16))
    x = x * jnp.int32(-2048144789)        # 0x85ebca6b
    x = jnp.bitwise_xor(x, _lsr(x, 13))
    x = x * jnp.int32(-1028477387)        # 0xc2b2ae35
    x = jnp.bitwise_xor(x, _lsr(x, 16))
    return x


def _keep_mask(idx, seed, keep_prob):
    """Bernoulli(keep_prob) mask keyed on (seed, global element index).

    keep_prob is quantized to 2**-24 (negligible bias).  The random stream
    cannot be bit-identical to torch.nn.Dropout's RNG.
    """
    r = _fmix32(jnp.bitwise_xor(idx, seed * jnp.int32(_GOLDEN)))
    r24 = jnp.bitwise_and(r, jnp.int32(0x00FFFFFF))       # uniform in [0, 2^24)
    return r24 < jnp.int32(int(round(keep_prob * (1 << 24))))


# ---------------------------------------------------------------------------
# kernels -- flat 2-D layout: emb/out view (S, B*D), pe (S, D)
#   pe is added per batch slice (no (block_s, B*D) pe temporary / lane concat)
# ---------------------------------------------------------------------------
def _pe2d_eval_kernel(emb_ref, pe_ref, out_ref, *, scale, batch, dim):
    pe = pe_ref[...]                                      # (block_s, D)
    for b in range(batch):                                # static unroll over batch
        sl = pl.ds(b * dim, dim)
        out_ref[:, sl] = (emb_ref[:, sl] * scale + pe).astype(out_ref.dtype)


def _pe2d_train_kernel(seed_ref, emb_ref, pe_ref, out_ref, *,
                       scale, batch, dim, keep_prob):
    bs = out_ref.shape[0]
    row0 = pl.program_id(0) * bs                          # global row offset of this block
    rows = row0 + jax.lax.broadcasted_iota(jnp.int32, (bs, dim), 0)
    cols = jax.lax.broadcasted_iota(jnp.int32, (bs, dim), 1)
    pe = pe_ref[...]
    seed = seed_ref[0]
    inv_keep = 1.0 / keep_prob
    for b in range(batch):
        sl = pl.ds(b * dim, dim)
        x = emb_ref[:, sl] * scale + pe
        idx = (rows * batch + b) * dim + cols             # (s*B + b)*D + d
        keep = _keep_mask(idx, seed, keep_prob)
        out_ref[:, sl] = jnp.where(keep, x * inv_keep, 0.0).astype(out_ref.dtype)


# ---------------------------------------------------------------------------
# kernels -- 3-D layout (D % 128 == 0, batch fills sublanes): blocks (block_s, B, D)
#   pe added via sublane broadcast -- no widening temporary at all.
# ---------------------------------------------------------------------------
def _pe3d_eval_kernel(emb_ref, pe_ref, out_ref, *, scale):
    out_ref[...] = (emb_ref[...] * scale + pe_ref[...][:, None, :]).astype(out_ref.dtype)


def _pe3d_train_kernel(seed_ref, emb_ref, pe_ref, out_ref, *, scale, keep_prob):
    bs, B, D = out_ref.shape
    row0 = pl.program_id(0) * bs
    # global element index (s*B + b)*D + d, built from 2-D iotas (lane dim last)
    s_ids = row0 + jax.lax.broadcasted_iota(jnp.int32, (bs, D), 0)
    d_ids = jax.lax.broadcasted_iota(jnp.int32, (bs, D), 1)
    sd = s_ids * (B * D) + d_ids                          # (bs, D)
    b_off = jax.lax.broadcasted_iota(jnp.int32, (B, D), 0) * D   # (B, D)
    idx = sd[:, None, :] + b_off[None, :, :]              # (bs, B, D)
    keep = _keep_mask(idx, seed_ref[0], keep_prob)
    x = emb_ref[...] * scale + pe_ref[...][:, None, :]
    out_ref[...] = jnp.where(keep, x * (1.0 / keep_prob), 0.0).astype(out_ref.dtype)


# ---------------------------------------------------------------------------
# tiling / VMEM sizing
# ---------------------------------------------------------------------------
def _round_up(x, m):
    return -(-x // m) * m


def _hw_budget():
    """(target tile bytes, scoped-VMEM cap) per TPU generation (conservative default)."""
    cap = 64 * 1024 * 1024                      # assume v7x-class if we cannot query
    try:
        cap = int(getattr(pltpu.get_tpu_info(), "vmem_capacity_bytes", cap))
    except Exception:
        pass
    if cap > 64 * 1024 * 1024:                  # v5e / v6e: 128 MiB physical VMEM
        return 12 * 1024 * 1024, 64 * 1024 * 1024
    return 6 * 1024 * 1024, 48 * 1024 * 1024    # v7x: 64 MiB physical VMEM


def _choose_block_s(S, row_bytes, sub_step, target_bytes):
    """Sublane-multiple block_s: ~target-sized tiles, >= 2 grid steps when S allows."""
    target_rows = max(sub_step,
                      (target_bytes // max(row_bytes, 1)) // sub_step * sub_step)
    block_s = target_rows
    if S >= 2 * sub_step:                       # keep >= 2 grid steps (pipelining / 2 TCs)
        half = _round_up(_round_up(S, 2) // 2, sub_step)
        block_s = min(block_s, half)
    if block_s >= S:
        return S
    return block_s


# ---------------------------------------------------------------------------
# wrapper
# ---------------------------------------------------------------------------
def positional_encoding(emb, pe_table, *, dropout_p=0.1, train=False, seed=0,
                        block_s=None):
    """emb: (S, B, D).  pe_table: (max_len, D).  Returns dropout(emb*sqrt(D) + pe[:S])."""
    assert emb.ndim == 3
    S, B, D = emb.shape
    assert pe_table.shape[0] >= S and pe_table.shape[1] == D
    scale = math.sqrt(D)
    itemsize = emb.dtype.itemsize
    sub_step = max(8, 32 // itemsize)            # dtype-aware sublane packing step

    # Layout selection: 3-D blocks when lanes are already dense (D % 128 == 0)
    # and the batch fills the sublanes; otherwise the flat 2-D view (always
    # sublane-dense, lane-dense whenever B*D % 128 == 0).
    use_3d = (D % 128 == 0) and (B >= sub_step)

    pe = pe_table[:S].astype(emb.dtype)          # == self.pe[:emb.size(0)], cast once

    pad_b = _round_up(B, sub_step) if use_3d else B
    row_bytes = pad_b * D * itemsize
    target_tile, vmem_cap = _hw_budget()
    if block_s is None:
        block_s = _choose_block_s(S, row_bytes, sub_step, target_tile)
    else:
        block_s = min(block_s, S)
        assert block_s == S or block_s % 8 == 0, "block_s must be a multiple of 8 or >= S"
    grid = (pl.cdiv(S, block_s),)                # ragged last block is masked by Pallas

    emb_tile = block_s * row_bytes
    pe_tile = block_s * D * itemsize
    need = 2 * (2 * emb_tile + pe_tile)          # double-buffered emb-in + out + pe
    vmem_limit = int(min(vmem_cap, max(32 * 1024 * 1024, int(1.5 * need))))

    # TODO(synk): on v7x, pltpu.CORE_PARALLEL (or an explicit core_map) would
    # guarantee the grid splits across both TensorCores; plain "parallel" is
    # kept here for portability across generations.
    cparams = pltpu.CompilerParams(dimension_semantics=("parallel",),
                                   vmem_limit_bytes=vmem_limit)

    if use_3d:
        x_in = emb
        out_shape = jax.ShapeDtypeStruct((S, B, D), emb.dtype)
        x_spec = pl.BlockSpec((block_s, B, D), lambda i, *_: (i, 0, 0))
        kern_eval = functools.partial(_pe3d_eval_kernel, scale=scale)
        kern_train = functools.partial(_pe3d_train_kernel, scale=scale,
                                       keep_prob=1.0 - dropout_p)
    else:
        x_in = emb.reshape(S, B * D)             # contiguous row-major -> free view
        out_shape = jax.ShapeDtypeStruct((S, B * D), emb.dtype)
        x_spec = pl.BlockSpec((block_s, B * D), lambda i, *_: (i, 0))
        kern_eval = functools.partial(_pe2d_eval_kernel, scale=scale, batch=B, dim=D)
        kern_train = functools.partial(_pe2d_train_kernel, scale=scale, batch=B,
                                       dim=D, keep_prob=1.0 - dropout_p)
    pe_spec = pl.BlockSpec((block_s, D), lambda i, *_: (i, 0))

    if (not train) or dropout_p == 0.0:
        out = pl.pallas_call(
            kern_eval,
            out_shape=out_shape,
            grid_spec=pl.GridSpec(grid=grid, in_specs=[x_spec, pe_spec],
                                  out_specs=x_spec),
            # torch mutates emb in place; true in-place only when the caller
            # donates emb at a jit boundary, otherwise XLA inserts a copy.
            input_output_aliases={0: 0},
            compiler_params=cparams,
        )(x_in, pe)
    else:
        assert 0.0 < dropout_p < 1.0
        seed_arr = jnp.asarray([seed], dtype=jnp.int32)
        out = pl.pallas_call(
            kern_train,
            out_shape=out_shape,
            grid_spec=pltpu.PrefetchScalarGridSpec(
                num_scalar_prefetch=1, grid=grid,
                in_specs=[x_spec, pe_spec], out_specs=x_spec),
            input_output_aliases={1: 0},         # emb (after the prefetched seed) -> out
            compiler_params=cparams,
        )(seed_arr, x_in, pe)

    return out if use_3d else out.reshape(S, B, D)


# ---------------------------------------------------------------------------
# main
# ---------------------------------------------------------------------------
if __name__ == "__main__":
    MAX_LEN = 64
    DROPOUT_P = 0.1
    keep_prob = 1.0 - DROPOUT_P

    def reference(emb, pe_table):
        S, _, D = emb.shape
        return emb * math.sqrt(D) + pe_table[:S][:, None, :]

    def check_train(out_tr, ref):
        kept = jnp.abs(out_tr) > 0
        # every kept element equals ref / keep_prob; dropped ones are exactly 0
        ok = jnp.all(jnp.where(kept, jnp.abs(out_tr - ref / keep_prob), 0.0) < 1e-4)
        assert bool(ok)
        rate = float(jnp.mean(kept.astype(jnp.float32)))
        assert 0.75 < rate < 0.98, rate

    # --- case 1: small module-like shape -> flat 2-D path -------------------
    S, B, D = 8, 2, 32
    emb = jax.random.normal(jax.random.PRNGKey(0), (S, B, D), dtype=jnp.float32)
    pe_table = make_positional_encoding_table(MAX_LEN, D)
    ref = reference(emb, pe_table)

    out = jax.block_until_ready(
        positional_encoding(emb, pe_table, dropout_p=DROPOUT_P, train=False))
    assert out.shape == (S, B, D) and out.dtype == emb.dtype
    assert jnp.allclose(out, ref, atol=1e-5, rtol=1e-5)

    out_tr = jax.block_until_ready(
        positional_encoding(emb, pe_table, dropout_p=DROPOUT_P, train=True, seed=123))
    assert out_tr.shape == (S, B, D) and out_tr.dtype == emb.dtype
    check_train(out_tr, ref)

    # --- case 2: lane-dense 3-D path + ragged last block (S=20, block_s=16) -
    S2, B2, D2 = 20, 8, 128
    emb2 = jax.random.normal(jax.random.PRNGKey(1), (S2, B2, D2), dtype=jnp.float32)
    pe_table2 = make_positional_encoding_table(MAX_LEN, D2)
    ref2 = reference(emb2, pe_table2)

    out2 = jax.block_until_ready(
        positional_encoding(emb2, pe_table2, dropout_p=DROPOUT_P, train=False,
                            block_s=16))
    assert out2.shape == (S2, B2, D2)
    assert jnp.allclose(out2, ref2, atol=1e-5, rtol=1e-5)

    out2_tr = jax.block_until_ready(
        positional_encoding(emb2, pe_table2, dropout_p=DROPOUT_P, train=True,
                            seed=7, block_s=16))
    check_train(out2_tr, ref2)

    print("KERNEL_OK")
</pallas_src>

<mosaic_0001>
module attributes {stable_mosaic.version = 11 : i64} {
  func.func @_pe2d_eval_kernel(%arg0: i32, %arg1: memref<8x64xf32, #tpu.memory_space<vmem>>, %arg2: memref<8x32xf32, #tpu.memory_space<vmem>>, %arg3: memref<8x64xf32, #tpu.memory_space<vmem>>) attributes {dimension_semantics = [#tpu.dimension_semantics<parallel>], iteration_bounds = array<i64: 1>, scalar_prefetch = 0 : i64, scratch_operands = 0 : i64, tpu.core_type = #tpu.core_type<tc>, window_params = [{transform_indices = @transform_0, window_bounds = array<i64: 8, 64>}, {transform_indices = @transform_1, window_bounds = array<i64: 8, 32>}, {transform_indices = @transform_2, window_bounds = array<i64: 8, 64>}]} {
    %c0 = arith.constant 0 : index
    %c0_0 = arith.constant 0 : index
    %0 = vector.load %arg2[%c0, %c0_0] : memref<8x32xf32, #tpu.memory_space<vmem>>, vector<8x32xf32>
    %c0_1 = arith.constant 0 : index
    %c0_2 = arith.constant 0 : index
    %1 = vector.load %arg1[%c0_1, %c0_2] : memref<8x64xf32, #tpu.memory_space<vmem>>, vector<8x32xf32>
    %cst = arith.constant 5.65685415 : f32
    %2 = vector.broadcast %cst : f32 to vector<8x32xf32>
    %3 = arith.mulf %1, %2 : vector<8x32xf32>
    %4 = arith.addf %3, %0 : vector<8x32xf32>
    %c0_3 = arith.constant 0 : index
    %c0_4 = arith.constant 0 : index
    %5 = vector.load %arg3[%c0_3, %c0_4] : memref<8x64xf32, #tpu.memory_space<vmem>>, vector<8x32xf32>
    tpu.vector_store %arg3[%c0_3, %c0_4], %4 {strides = array<i32>} : memref<8x64xf32, #tpu.memory_space<vmem>>, vector<8x32xf32>,
    %c0_5 = arith.constant 0 : index
    %c32 = arith.constant 32 : index
    %6 = vector.load %arg1[%c0_5, %c32] : memref<8x64xf32, #tpu.memory_space<vmem>>, vector<8x32xf32>
    %cst_6 = arith.constant 5.65685415 : f32
    %7 = vector.broadcast %cst_6 : f32 to vector<8x32xf32>
    %8 = arith.mulf %6, %7 : vector<8x32xf32>
    %9 = arith.addf %8, %0 : vector<8x32xf32>
    %c0_7 = arith.constant 0 : index
    %c32_8 = arith.constant 32 : index
    %10 = vector.load %arg3[%c0_7, %c32_8] : memref<8x64xf32, #tpu.memory_space<vmem>>, vector<8x32xf32>
    tpu.vector_store %arg3[%c0_7, %c32_8], %9 {strides = array<i32>} : memref<8x64xf32, #tpu.memory_space<vmem>>, vector<8x32xf32>,
    return
  }
  func.func @transform_0(%arg0: i32) -> (i32, i32) {
    %c0_i32 = arith.constant 0 : i32
    %c0_i32_0 = arith.constant 0 : i32
    return %arg0, %c0_i32 : i32, i32
  }
  func.func @transform_1(%arg0: i32) -> (i32, i32) {
    %c0_i32 = arith.constant 0 : i32
    %c0_i32_0 = arith.constant 0 : i32
    return %arg0, %c0_i32 : i32, i32
  }
  func.func @transform_2(%arg0: i32) -> (i32, i32) {
    %c0_i32 = arith.constant 0 : i32
    %c0_i32_0 = arith.constant 0 : i32
    return %arg0, %c0_i32 : i32, i32
  }
}

</mosaic_0001>

<llo_original>
// kernel: tpu_custom_call.1
$region0: #{tpu_custom_call.1}
  #allocation0 [shape = 'u32[]', space=smem, size = 0x4, offset = 0x4, fixed_abs, tag = 'smem constant byte address 0x4 - core index']
  #allocation1 [shape = 'u32[144,128]{1,0:T(1,128)}', space=vmem, size = 0x12000, scoped, tag = 'internal scratch']
  %s0 = inlined_call_operand.hbm [shape: f32[8,64], index: 0, kind: input, shape index: {}, may-alias: {0,2}]
  %s1 = inlined_call_operand.vmem [shape: f32[8,32], index: 1, kind: input, shape index: {}]
  %s2 = inlined_call_operand.hbm [shape: f32[8,64], index: 2, kind: output, shape index: {}, may-alias: {0,2}]
  %s3 = sld [smem:[#allocation0]]
  $region22: #{tpu_custom_call.1} parent=0
    _
  %s5 = ssub.s32 1, %s3
  %s6 = scalar_select 0, %s5, %s3
  $region1: #{tpu_custom_call.1} parent=0
    #allocation2 [shape = 'u8[4096]{0}', space=vmem, size = 0x1000, scoped, tag = 'input window, operand 0, single buffered']
    #allocation3 [shape = 's32[1]{0}', space=sflag, size = 0x4, scoped, tag = 'scoped memory for tpu_custom_call.1']
    #allocation4 [shape = 's32[1]{0}', space=sflag, size = 0x4, scoped, tag = 'scoped memory for tpu_custom_call.1']
    #allocation5 [shape = 'u8[4096]{0}', space=vmem, size = 0x1000, scoped, tag = 'output window, operand 0, single buffered']
    %7 = vsyncpa [#allocation3], 0
    %8 = vsyncpa [#allocation4], 0
    // Predicated region
    $region2: #{tpu_custom_call.1} parent=1 // pred_check
      _
    $region3: #{tpu_custom_call.1} parent=1 // pred_check_branch
      %10 = sbr.rel (0) target = $region5
    $region4: #{tpu_custom_call.1} parent=1 // pred_region
      %s12 = ssub.s32 128, 128
      %13 = vsyncadd [#allocation3], %s12
      %s15 = sshll.u32 [#allocation2], 4
      %s16 = int_to_ptr.vmem [resolvable:$true] %s15
      %18 = dma.hbm_to_vmem [thread:$0]  %s0, 128, %s16, [#allocation3]
    $region5: #{tpu_custom_call.1} parent=1 // pred_fallthru
      _
    // Predicated region
    $region6: #{tpu_custom_call.1} parent=1 // pred_check
      _
    $region7: #{tpu_custom_call.1} parent=1 // pred_check_branch
      %20 = sbr.rel (0) target = $region9
    $region8: #{tpu_custom_call.1} parent=1 // pred_region
      _
    $region9: #{tpu_custom_call.1} parent=1 // pred_fallthru
      _
    // Predicated region
    $region10: #{tpu_custom_call.1} parent=1 // pred_check
      _
    $region11: #{tpu_custom_call.1} parent=1 // pred_check_branch
      %22 = sbr.rel (0) target = $region13
    $region12: #{tpu_custom_call.1} parent=1 // pred_region
      %23 = dma.done [#allocation3], 128
    $region13: #{tpu_custom_call.1} parent=1 // pred_fallthru
      _
    %v24 = vld [vmem:[%s1] sm:$0xff]
    %v25 = vld [vmem:[#allocation2] sm:$0xff]
    %v26 = vmul.f32 %v25, 5.656854
    %v27 = vadd.f32 %v26, %v24
    %vm28 = vcmask 261120
    %29 = vst.msk [vmem:[#allocation5] sm:$0xff] %vm28, %v27
    %v30 = vld [vmem:[#allocation2] sm:$0xff]
    %v31 = vmul.f32 %v30, 5.656854
    %33 = vrot.lane.b32.xlu0 %v24, 32
    %v34 = vpop.permute.xlu0 %33
    %v36 = vadd.f32 %v31, %v34
    %vm37 = vcmask 523520
    %38 = vst.msk [vmem:[#allocation5] sm:$0xff] %vm37, %v36
    // Predicated region
    $region14: #{tpu_custom_call.1} parent=1 // pred_check
      _
    $region15: #{tpu_custom_call.1} parent=1 // pred_check_branch
      %40 = sbr.rel (0) target = $region17
    $region16: #{tpu_custom_call.1} parent=1 // pred_region
      %s42 = ssub.s32 128, 128
      %43 = vsyncadd [#allocation4], %s42
      %s45 = sshll.u32 [#allocation5], 4
      %s46 = int_to_ptr.vmem [resolvable:$true] %s45
      %48 = dma.vmem_to_hbm [thread:$0]  %s46, 128, %s2, [#allocation4]
    $region17: #{tpu_custom_call.1} parent=1 // pred_fallthru
      _
    // Predicated region
    $region18: #{tpu_custom_call.1} parent=1 // pred_check
      _
    $region19: #{tpu_custom_call.1} parent=1 // pred_check_branch
      %50 = sbr.rel (0) target = $region21
    $region20: #{tpu_custom_call.1} parent=1 // pred_region
      %51 = dma.done [#allocation4], 128
    $region21: #{tpu_custom_call.1} parent=1 // pred_fallthru
      _
    %52 = vsyncpa [#allocation3], 1
    %53 = vsyncpa [#allocation4], 1

</llo_original>
